<compile_context>
chip_gen: v6e
topology: v6e:2x2x1
jax: 0.10.0
libtpu: 0.0.40
codegen_flags: <defaults>
</compile_context>

<pallas_src>
import math

import jax
import jax.numpy as jnp
import numpy as np
from jax.experimental import pallas as pl
from jax.experimental.pallas import tpu as pltpu


def _round_up(x, m):
    return ((x + m - 1) // m) * m


def _default_q_tile():
    """Pick the q-tile per generation: smaller on v7x (64 MiB VMEM/TC)."""
    try:
        info = pltpu.get_tpu_info()
        if info.vmem_capacity_bytes <= (64 << 20):
            return 512
        return 1024
    except Exception:
        return 512


def _deconv_gemm_kernel(x_ref, w_ref, b_ref, y_ref):
    """One fused polyphase GEMM tile.

    x_ref: (1, TQ, J*Cin)      polyphase im2col input tile (compute dtype)
    w_ref: (J*Cin, S*Cout)     phase-major fused weights   (compute dtype)
    b_ref: (1, S*Cout)         bias broadcast over phases  (f32)
    y_ref: (1, TQ, S*Cout)     output tile
    """
    acc = jnp.dot(x_ref[0], w_ref[...], preferred_element_type=jnp.float32)
    y_ref[0] = (acc + b_ref[...]).astype(y_ref.dtype)


def non_causal_conv_transpose1d(x, weight, bias=None, *, stride, padding=-1,
                                output_padding=-1, q_tile=None,
                                compute_dtype=jnp.bfloat16):
    """Matches NonCausalConvTranspose1d.forward (groups=1).

    x:      (B, C_in, T)      -- PyTorch NCT layout
    weight: (C_in, C_out, K)  -- PyTorch ConvTranspose1d weight layout
    bias:   (C_out,) or None
    returns (B, C_out, T_out), T_out = (T-1)*stride - 2*pad + K + out_pad.
    """
    if padding < 0:
        padding = (stride + 1) // 2
    if output_padding < 0:
        output_padding = 1 if stride % 2 else 0
    if q_tile is None:
        q_tile = _default_q_tile()

    B, c_in, T = x.shape
    w_cin, c_out, K = weight.shape
    assert w_cin == c_in, "groups != 1 not supported"
    s = stride
    t_out = (T - 1) * s - 2 * padding + K + output_padding

    # ---------- polyphase geometry ----------------------------------------
    J = -(-K // s)                              # taps per phase (ceil(K/s))
    q_total = -(-(padding + t_out) // s)        # q rows needed to cover output
    tq = min(q_tile, _round_up(q_total, 8))     # q-tile (sublane aligned)
    q_pad = _round_up(q_total, tq)
    jcin = J * c_in
    scout = s * c_out

    # ---------- wrapper glue (cheap XLA): im2col over J taps, no zero-stuff -
    x_tc = jnp.transpose(x, (0, 2, 1))          # (B, T, Cin)
    shifts = []
    for j in range(J):                          # X_taps[:, q, j] = x[:, q - j]
        pad_after = q_pad - T - j
        if pad_after >= 0:
            sj = jnp.pad(x_tc, ((0, 0), (j, pad_after), (0, 0)))
        else:
            sj = jnp.pad(x_tc, ((0, 0), (j, 0), (0, 0)))[:, :q_pad, :]
        shifts.append(sj)
    x_taps = jnp.concatenate(shifts, axis=2).astype(compute_dtype)  # (B,Qp,J*Cin)

    # phase-major fused weights: Wp[j*Cin+cin, r*Cout+cout] = W[cin,cout,j*s+r]
    w_k = jnp.pad(weight, ((0, 0), (0, 0), (0, J * s - K)))          # (Cin,Cout,J*s)
    w_p = jnp.transpose(w_k.reshape(c_in, c_out, J, s), (2, 0, 3, 1))
    w_p = w_p.reshape(jcin, scout).astype(compute_dtype)

    if bias is None:
        bias = jnp.zeros((c_out,), jnp.float32)
    bias_s = jnp.tile(bias.astype(jnp.float32), s).reshape(1, scout)

    # ---------- VMEM budget / cost hint ------------------------------------
    cbytes = np.dtype(compute_dtype).itemsize
    obytes = np.dtype(x.dtype).itemsize
    needed = (2 * tq * jcin * cbytes           # double-buffered input tile
              + 2 * jcin * scout * cbytes      # weights
              + 2 * scout * 4                  # bias
              + 2 * tq * scout * obytes)       # double-buffered output tile
    vmem_limit = int(min(max(2 * needed, 16 << 20), 48 << 20))
    cost = pl.CostEstimate(
        flops=2 * B * q_pad * jcin * scout,
        transcendentals=0,
        bytes_accessed=int(x_taps.size * cbytes + w_p.size * cbytes
                           + B * q_pad * scout * obytes))

    # ---------- Pallas call: grid (batch, q-tiles), both parallel -----------
    y_full = pl.pallas_call(
        _deconv_gemm_kernel,
        out_shape=jax.ShapeDtypeStruct((B, q_pad, scout), x.dtype),
        grid=(B, q_pad // tq),
        in_specs=[
            pl.BlockSpec((1, tq, jcin), lambda b, q: (b, q, 0)),
            pl.BlockSpec((jcin, scout), lambda b, q: (0, 0)),
            pl.BlockSpec((1, scout), lambda b, q: (0, 0)),
        ],
        out_specs=pl.BlockSpec((1, tq, scout), lambda b, q: (b, q, 0)),
        compiler_params=pltpu.CompilerParams(
            dimension_semantics=("parallel", "parallel"),
            vmem_limit_bytes=vmem_limit),
        cost_estimate=cost,
    )(x_taps, w_p, bias_s)

    # ---------- un-phase + crop + NCT layout (pure reshape + one transpose) -
    y_time = y_full.reshape(B, q_pad * s, c_out)          # time = q*s + r (free)
    y_time = y_time[:, padding:padding + t_out, :]        # crop torch padding
    return jnp.transpose(y_time, (0, 2, 1))               # (B, C_out, T_out)


def _ref_conv_transpose1d(x, w, b, stride, padding, output_padding):
    """Pure numpy reference matching torch.nn.ConvTranspose1d (groups=1)."""
    x = np.asarray(x, np.float32)
    w = np.asarray(w, np.float32)
    b = np.asarray(b, np.float32)
    B, c_in, T = x.shape
    _, c_out, K = w.shape
    L = (T - 1) * stride + K
    t_out = L - 2 * padding + output_padding
    full_len = max(L, padding + t_out)
    yf = np.zeros((B, c_out, full_len), np.float32)
    for t in range(T):
        for k in range(K):
            yf[:, :, t * stride + k] += x[:, :, t] @ w[:, :, k]
    return yf[:, :, padding:padding + t_out] + b[None, :, None]


if __name__ == "__main__":
    key = jax.random.PRNGKey(0)
    kx, kw, kb = jax.random.split(key, 3)

    B, c_in, c_out, T = 2, 4, 6, 16
    K, stride = 4, 2
    padding = (stride + 1) // 2                 # module default -> 1
    output_padding = 1 if stride % 2 else 0     # module default -> 0

    x = jax.random.normal(kx, (B, c_in, T), jnp.float32)
    bound = 1.0 / math.sqrt(c_in * K)
    weight = jax.random.uniform(kw, (c_in, c_out, K), jnp.float32, -bound, bound)
    bias = jax.random.uniform(kb, (c_out,), jnp.float32, -bound, bound)

    y = non_causal_conv_transpose1d(x, weight, bias, stride=stride)
    y = jax.block_until_ready(y)

    y_ref = _ref_conv_transpose1d(x, weight, bias, stride, padding, output_padding)
    assert y.shape == y_ref.shape, (y.shape, y_ref.shape)
    np.testing.assert_allclose(np.asarray(y), y_ref, rtol=2e-2, atol=2e-2)
    print("KERNEL_OK")
</pallas_src>

<mosaic_0001>
module attributes {stable_mosaic.version = 11 : i64} {
  func.func @_deconv_gemm_kernel(%arg0: i32, %arg1: i32, %arg2: memref<1x24x8xbf16, #tpu.memory_space<vmem>>, %arg3: memref<8x12xbf16, #tpu.memory_space<vmem>>, %arg4: memref<1x12xf32, #tpu.memory_space<vmem>>, %arg5: memref<1x24x12xf32, #tpu.memory_space<vmem>>) attributes {dimension_semantics = [#tpu.dimension_semantics<parallel>, #tpu.dimension_semantics<parallel>], iteration_bounds = array<i64: 2, 1>, scalar_prefetch = 0 : i64, scratch_operands = 0 : i64, tpu.core_type = #tpu.core_type<tc>, window_params = [{transform_indices = @transform_0, window_bounds = array<i64: 1, 24, 8>}, {pipeline_mode = #tpu.pipeline_mode<synchronous>, transform_indices = @transform_1, window_bounds = array<i64: 8, 12>}, {pipeline_mode = #tpu.pipeline_mode<synchronous>, transform_indices = @transform_2, window_bounds = array<i64: 1, 12>}, {transform_indices = @transform_3, window_bounds = array<i64: 1, 24, 12>}]} {
    %c0 = arith.constant 0 : index
    %c0_0 = arith.constant 0 : index
    %c0_1 = arith.constant 0 : index
    %0 = vector.load %arg2[%c0, %c0_0, %c0_1] : memref<1x24x8xbf16, #tpu.memory_space<vmem>>, vector<1x24x8xbf16>
    %1 = vector.shape_cast %0 : vector<1x24x8xbf16> to vector<24x8xbf16>
    %c0_2 = arith.constant 0 : index
    %c0_3 = arith.constant 0 : index
    %2 = vector.load %arg3[%c0_2, %c0_3] : memref<8x12xbf16, #tpu.memory_space<vmem>>, vector<8x12xbf16>
    %cst = arith.constant dense<0.000000e+00> : vector<24x12xf32>
    %3 = tpu.matmul %1, %2, %cst {dimension_numbers = #tpu.dot_dimension_numbers<[1], [0], [0], [1], [0, 0, 1, 1], [], []>} : vector<24x8xbf16>, vector<8x12xbf16>, vector<24x12xf32> -> vector<24x12xf32>
    %c0_4 = arith.constant 0 : index
    %c0_5 = arith.constant 0 : index
    %4 = vector.load %arg4[%c0_4, %c0_5] : memref<1x12xf32, #tpu.memory_space<vmem>>, vector<1x12xf32>
    %5 = vector.broadcast %4 : vector<1x12xf32> to vector<24x12xf32>
    %6 = arith.addf %3, %5 : vector<24x12xf32>
    %c0_6 = arith.constant 0 : index
    %c0_7 = arith.constant 0 : index
    %c0_8 = arith.constant 0 : index
    %7 = vector.load %arg5[%c0_6, %c0_7, %c0_8] : memref<1x24x12xf32, #tpu.memory_space<vmem>>, vector<1x24x12xf32>
    %8 = vector.shape_cast %7 : vector<1x24x12xf32> to vector<24x12xf32>
    %9 = vector.shape_cast %6 : vector<24x12xf32> to vector<1x24x12xf32>
    tpu.vector_store %arg5[%c0_6, %c0_7, %c0_8], %9 {strides = array<i32>} : memref<1x24x12xf32, #tpu.memory_space<vmem>>, vector<1x24x12xf32>,
    return
  }
  func.func @transform_0(%arg0: i32, %arg1: i32) -> (i32, i32, i32) {
    %c0_i32 = arith.constant 0 : i32
    %c0_i32_0 = arith.constant 0 : i32
    return %arg0, %arg1, %c0_i32 : i32, i32, i32
  }
  func.func @transform_1(%arg0: i32, %arg1: i32) -> (i32, i32) {
    %c0_i32 = arith.constant 0 : i32
    %c0_i32_0 = arith.constant 0 : i32
    %c0_i32_1 = arith.constant 0 : i32
    return %c0_i32, %c0_i32_0 : i32, i32
  }
  func.func @transform_2(%arg0: i32, %arg1: i32) -> (i32, i32) {
    %c0_i32 = arith.constant 0 : i32
    %c0_i32_0 = arith.constant 0 : i32
    %c0_i32_1 = arith.constant 0 : i32
    return %c0_i32, %c0_i32_0 : i32, i32
  }
  func.func @transform_3(%arg0: i32, %arg1: i32) -> (i32, i32, i32) {
    %c0_i32 = arith.constant 0 : i32
    %c0_i32_0 = arith.constant 0 : i32
    return %arg0, %arg1, %c0_i32 : i32, i32, i32
  }
}

</mosaic_0001>

<llo_original>
// kernel: tpu_custom_call.1
$region0: #{tpu_custom_call.1}
  #allocation0 [shape = 'u32[]', space=smem, size = 0x4, offset = 0x4, fixed_abs, tag = 'smem constant byte address 0x4 - core index']
  #allocation1 [shape = 'u32[144,128]{1,0:T(1,128)}', space=vmem, size = 0x12000, scoped, tag = 'internal scratch']
  %s0 = inlined_call_operand.vmem [shape: bf16[2,24,8], index: 0, kind: input, shape index: {}]
  %s1 = inlined_call_operand.vmem [shape: bf16[8,12], index: 1, kind: input, shape index: {}]
  %s2 = inlined_call_operand.vmem [shape: f32[1,12], index: 2, kind: input, shape index: {}]
  %s3 = inlined_call_operand.vmem [shape: f32[2,24,12], index: 3, kind: output, shape index: {}]
  %s4 = sld [smem:[#allocation0]]
  $region45: #{tpu_custom_call.1} parent=0
    _
  %s6 = ssub.s32 1, %s4
  %s7 = scalar_select 0, %s6, %s4
  loop: start=0, step=1, limit=4
  $region2: #{tpu_custom_call.1} parent=0 // loop_pre_header
    _
  $region3: #{tpu_custom_call.1} parent=0 // loop_header
    %s9 = sphi 0, %s13
    %p10 = scmp.ge.s32.totalorder %s9, 4
    %s16 = sphi 0, %s28
    %s17 = sphi 0, %s24
    %s18 = sphi 0, %s16
    %s19 = sphi 0, %s17
    %s20 = sphi 0, %s18
    %s21 = sphi 0, %s19
    %s33 = sphi 0, %s35
    %s36 = sphi 0, %s33
    %s37 = sphi 0, %s36
    %s53 = sphi 0, %s37
    %s57 = sphi 0, %s57
    %s59 = sphi 0, %s57
    %s60 = sphi 0, %s59
    %s74 = sphi 0, %s60
    %s78 = sphi 0, %s78
    %s80 = sphi 0, %s78
    %s81 = sphi 0, %s80
    %s95 = sphi 0, %s81
    %s103 = sphi 0, %s105
    %s106 = sphi 0, %s103
    %s107 = sphi 0, %s106
    %s123 = sphi 0, %s107
  $region4: #{tpu_custom_call.1} parent=0 // loop_header_branch
    %12 = sbr.rel (%p10) target = $region8
  $region5: #{tpu_custom_call.1} parent=0 // loop_body
    %s14 = ssub.s32 %s9, 1
    %s15 = ssub.s32 %s9, 2
    %s22 = sadd.s32 1, %s17
    %p23 = scmp.ge.s32.totalorder %s22, 1
    %s24 = scalar_select %p23, 0, %s22
    %s25 = sadd.s32 1, %s16
    %s26 = scalar_select %p23, %s25, %s16
    %p27 = scmp.ge.s32.totalorder %s26, 2
    %s28 = scalar_select %p27, 0, %s26
    %s29 = ssub.s32 %s16, %s28
    %s30 = ssub.s32 %s17, %s24
    %s31 = sor.u32 %s29, %s30
    %p32 = scmp.eq.s32.totalorder %s31, 0
    %s34 = sadd.s32 %s33, 1
    %s35 = scalar_select %p32, %s33, %s34
    %p38 = pneg %p32
    %p39 = scmp.eq.s32.totalorder %s9, 1
    %p40 = por %p38, %p39
    %p41 = scmp.ne.s32.totalorder %s33, %s36
    %p42 = scmp.eq.s32.totalorder %s9, 0
    %p43 = por %p41, %p42
    %p44 = scmp.ne.s32.totalorder %s33, %s36
    %p45 = scmp.eq.s32.totalorder %s14, 1
    %p46 = por %p44, %p45
    %p47 = scmp.ne.s32.totalorder %s36, %s37
    %p48 = scmp.eq.s32.totalorder %s14, 0
    %p49 = por %p47, %p48
    %p50 = scmp.ne.s32.totalorder %s36, %s37
    %p51 = scmp.eq.s32.totalorder %s15, 1
    %p52 = por %p50, %p51
    %p54 = scmp.ne.s32.totalorder %s37, %s53
    %p55 = scmp.eq.s32.totalorder %s15, 0
    %p56 = por %p54, %p55
    %s58 = sadd.s32 %s57, 1
    %p61 = scmp.eq.s32.totalorder %s9, 1
    %p62 = scmp.ne.s32.totalorder %s57, %s59
    %p63 = scmp.eq.s32.totalorder %s9, 0
    %p64 = por %p62, %p63
    %p65 = scmp.ne.s32.totalorder %s57, %s59
    %p66 = scmp.eq.s32.totalorder %s14, 1
    %p67 = por %p65, %p66
    %p68 = scmp.ne.s32.totalorder %s59, %s60
    %p69 = scmp.eq.s32.totalorder %s14, 0
    %p70 = por %p68, %p69
    %p71 = scmp.ne.s32.totalorder %s59, %s60
    %p72 = scmp.eq.s32.totalorder %s15, 1
    %p73 = por %p71, %p72
    %p75 = scmp.ne.s32.totalorder %s60, %s74
    %p76 = scmp.eq.s32.totalorder %s15, 0
    %p77 = por %p75, %p76
    %s79 = sadd.s32 %s78, 1
    %p82 = scmp.eq.s32.totalorder %s9, 1
    %p83 = scmp.ne.s32.totalorder %s78, %s80
    %p84 = scmp.eq.s32.totalorder %s9, 0
    %p85 = por %p83, %p84
    %p86 = scmp.ne.s32.totalorder %s78, %s80
    %p87 = scmp.eq.s32.totalorder %s14, 1
    %p88 = por %p86, %p87
    %p89 = scmp.ne.s32.totalorder %s80, %s81
    %p90 = scmp.eq.s32.totalorder %s14, 0
    %p91 = por %p89, %p90
    %p92 = scmp.ne.s32.totalorder %s80, %s81
    %p93 = scmp.eq.s32.totalorder %s15, 1
    %p94 = por %p92, %p93
    %p96 = scmp.ne.s32.totalorder %s81, %s95
    %p97 = scmp.eq.s32.totalorder %s15, 0
    %p98 = por %p96, %p97
    %s99 = ssub.s32 %s16, %s28
    %s100 = ssub.s32 %s17, %s24
    %s101 = sor.u32 %s99, %s100
    %p102 = scmp.eq.s32.totalorder %s101, 0
    %s104 = sadd.s32 %s103, 1
    %s105 = scalar_select %p102, %s103, %s104
    %p108 = pneg %p102
    %p109 = scmp.eq.s32.totalorder %s9, 1
    %p110 = por %p108, %p109
    %p111 = scmp.ne.s32.totalorder %s103, %s106
    %p112 = scmp.eq.s32.totalorder %s9, 0
    %p113 = por %p111, %p112
    %p114 = scmp.ne.s32.totalorder %s103, %s106
    %p115 = scmp.eq.s32.totalorder %s14, 1
    %p116 = por %p114, %p115
    %p117 = scmp.ne.s32.totalorder %s106, %s107
    %p118 = scmp.eq.s32.totalorder %s14, 0
    %p119 = por %p117, %p118
    %p120 = scmp.ne.s32.totalorder %s106, %s107
    %p121 = scmp.eq.s32.totalorder %s15, 1
    %p122 = por %p120, %p121
    %p124 = scmp.ne.s32.totalorder %s107, %s123
    %p125 = scmp.eq.s32.totalorder %s15, 0
    %p126 = por %p124, %p125
    %p127 = scmp.le.s32.totalorder 1, %s9
    %p128 = scmp.lt.s32.totalorder %s9, 3
    %p129 = pnand %p127, %p128
    %p130 = pneg %p129
    // Predicated region
    $region9: #{tpu_custom_call.1} parent=5 // pred_check
      _
    $region10: #{tpu_custom_call.1} parent=5 // pred_check_branch
      %132 = sbr.rel (%p129) target = $region12
    $region11: #{tpu_custom_call.1} parent=5 // pred_region
      %s133 = ssub.s32 %s9, 1
      // Predicated region
      $region13: #{tpu_custom_call.1} parent=11 // pred_check
        %p134 = pneg %p70
      $region14: #{tpu_custom_call.1} parent=11 // pred_check_branch
        %136 = sbr.rel (%p134) target = $region16
      $region15: #{tpu_custom_call.1} parent=11 // pred_region
        _
      $region16: #{tpu_custom_call.1} parent=11 // pred_fallthru
        _
      // Predicated region
      $region17: #{tpu_custom_call.1} parent=11 // pred_check
        %p137 = pneg %p91
      $region18: #{tpu_custom_call.1} parent=11 // pred_check_branch
        %139 = sbr.rel (%p137) target = $region20
      $region19: #{tpu_custom_call.1} parent=11 // pred_region
        _
      $region20: #{tpu_custom_call.1} parent=11 // pred_fallthru
        _
    $region12: #{tpu_custom_call.1} parent=5 // pred_fallthru
      _
    %p140 = scmp.lt.s32.totalorder %s9, 2
    // Predicated region
    $region21: #{tpu_custom_call.1} parent=5 // pred_check
      %p141 = pneg %p140
    $region22: #{tpu_custom_call.1} parent=5 // pred_check_branch
      %143 = sbr.rel (%p141) target = $region24
    $region23: #{tpu_custom_call.1} parent=5 // pred_region
      // Predicated region
      $region25: #{tpu_custom_call.1} parent=23 // pred_check
        %p144 = pneg %p43
      $region26: #{tpu_custom_call.1} parent=23 // pred_check_branch
        %146 = sbr.rel (%p144) target = $region28
      $region27: #{tpu_custom_call.1} parent=23 // pred_region
        %s147 = smul.u32 3, %s17
        %p148 = scmp.lt.s32.totalorder %s16, 1
        %s149 = scalar_select %p148, %s16, 1
        %p150 = scmp.lt.s32.totalorder %s147, 2
        %s151 = scalar_select %p150, %s147, 2
        %s152 = smul.addr %s149, 3
        %s153 = sadd.s32 %s151, %s152
        %s154 = smul.addr %s153, 4
        %s155 = scalar_lea.vmem %s0, %s154
        %s156 = smul.u32 3, %s17
      $region28: #{tpu_custom_call.1} parent=23 // pred_fallthru
        _
    $region24: #{tpu_custom_call.1} parent=5 // pred_fallthru
      _
    %p157 = scmp.le.s32.totalorder 1, %s9
    %p158 = scmp.lt.s32.totalorder %s9, 3
    %p159 = pnand %p157, %p158
    %p160 = pneg %p159
    // Predicated region
    $region29: #{tpu_custom_call.1} parent=5 // pred_check
      _
    $region30: #{tpu_custom_call.1} parent=5 // pred_check_branch
      %162 = sbr.rel (%p159) target = $region32
    $region31: #{tpu_custom_call.1} parent=5 // pred_region
      %s163 = ssub.s32 %s9, 1
      %s164 = smul.u32 3, %s19
      %p165 = scmp.lt.s32.totalorder %s18, 1
      %s166 = scalar_select %p165, %s18, 1
      %p167 = scmp.lt.s32.totalorder %s164, 2
      %s168 = scalar_select %p167, %s164, 2
      %s169 = smul.addr %s166, 3
      %s170 = sadd.s32 %s168, %s169
      %s171 = smul.addr %s170, 4
      %s172 = scalar_lea.vmem %s0, %s171
      %p173 = pneg %p49
      %p174 = pneg %p46
      %p175 = pneg %p70
      %p176 = pneg %p67
      %p177 = pneg %p91
      %p178 = pneg %p88
      %p179 = pneg %p119
      %p180 = pneg %p116
      %s181 = smul.u32 3, %s19
      %p182 = scmp.lt.s32.totalorder %s18, 1
      %s183 = scalar_select %p182, %s18, 1
      %p184 = scmp.lt.s32.totalorder %s181, 2
      %s185 = scalar_select %p184, %s181, 2
      %s186 = smul.addr %s183, 3
      %s187 = sadd.s32 %s185, %s186
      %s188 = smul.addr %s187, 8
      %s189 = scalar_lea.vmem %s3, %s188
      %s190 = smul.u32 3, %s19
      %p191 = scmp.lt.s32.totalorder %s18, 1
      %s192 = scalar_select %p191, %s18, 1
      %p193 = scmp.lt.s32.totalorder %s190, 2
      %s194 = scalar_select %p193, %s190, 2
      %s195 = smul.addr %s192, 3
      %s196 = sadd.s32 %s194, %s195
      %s197 = smul.addr %s196, 4
      %s198 = scalar_lea.vmem %s0, %s197
      %s199 = smul.u32 3, %s19
      %s200 = smul.u32 3, %s19
      %p201 = scmp.lt.s32.totalorder %s18, 1
      %s202 = scalar_select %p201, %s18, 1
      %p203 = scmp.lt.s32.totalorder %s200, 2
      %s204 = scalar_select %p203, %s200, 2
      %s205 = smul.addr %s202, 3
      %s206 = sadd.s32 %s204, %s205
      %s207 = smul.addr %s206, 8
      %s208 = scalar_lea.vmem %s3, %s207
      %s209 = smul.u32 3, %s19
      %v211 = vld [vmem:[%s198] sm:$0xf]
      %v212 = vld [vmem:[%s198 + $0x4] sm:$0xf]
      %v213 = vld [vmem:[%s198 + $0x8] sm:$0xf]
      %v214 = vld [vmem:[%s1] sm:$0xf]
      %v215 = vld [vmem:[%s2] sm:$0x1]
      %v217 = vlaneseq
      %v218 = vshrl.u32 %v217, 7
      %v219 = vsub.s32 0, %v218
      %v220 = vrot.slane %v215, %v219
      %v225 = vunpack.c.l.b16 %v211
      %v226 = vunpack.c.l.b16 %v212
      %v227 = vunpack.c.l.b16 %v213
      %v228 = vpack.c.b16 %v226, %v225
      %v229 = vpack.c.b16 %v227, %v227
      %vm230 = vcmask 64512
      %v232 = vsel %vm230, %v228, 0
      %v235 = vsel %vm230, %v229, 0
      %vm237 = vcmask 1043456
      %v239 = vsel %vm237, %v214, 0
      %241 = vmatprep.subr.bf16.mxu0 0
      %242 = vmatpush1.bf16.msra.mxu0 0
      %243 = vmatprep.subr.bf16.mxu0 0
      %244 = vmatpush1.bf16.msra.mxu0 0
      %245 = vmatprep.subr.bf16.mxu0 0
      %246 = vmatpush1.bf16.msra.mxu0 0
      %247 = vmatprep.subr.bf16.mxu0 0
      %248 = vmatpush1.bf16.msra.mxu0 0
      %249 = vmatprep.subr.bf16.mxu0 0
      %250 = vmatpush1.bf16.msra.mxu0 0
      %251 = vmatprep.subr.bf16.mxu0 0
      %252 = vmatpush1.bf16.msra.mxu0 0
      %253 = vmatprep.subr.bf16.mxu0 0
      %254 = vmatpush1.bf16.msra.mxu0 0
      %255 = vmatprep.subr.bf16.mxu0 0
      %256 = vmatpush1.bf16.msra.mxu0 %v239
      %257 = vmatprep.subr.bf16.mxu0 0
      %258 = vmatpush2.bf16.msra.mxu0 0
      %259 = vmatprep.subr.bf16.mxu0 0
      %260 = vmatpush2.bf16.msra.mxu0 0
      %261 = vmatprep.subr.bf16.mxu0 0
      %262 = vmatpush2.bf16.msra.mxu0 0
      %263 = vmatprep.subr.bf16.mxu0 0
      %264 = vmatpush2.bf16.msra.mxu0 0
      %265 = vmatprep.subr.bf16.mxu0 0
      %266 = vmatpush2.bf16.msra.mxu0 0
      %267 = vmatprep.subr.bf16.mxu0 0
      %268 = vmatpush2.bf16.msra.mxu0 0
      %269 = vmatprep.subr.bf16.mxu0 0
      %270 = vmatpush2.bf16.msra.mxu0 0
      %271 = vmatprep.subr.bf16.mxu0 0
      %272 = vmatpush2.bf16.msra.mxu0 0
      %273 = vmatprep.mubr.bf16.mxu0 0
      %274 = vmatmul.mubr.bf16.gmra.mxu0 %v232
      %v275 = vpop.f32.mrf.mxu0
      %v276 = vadd.f32 %v220, %v275
      %v277 = vpop.f32.mrf.mxu0
      %v278 = vpop.f32.mrf.mxu0
      %v279 = vadd.f32 %v220, %v278
      %v280 = vpop.f32.mrf.mxu0
      %281 = vmatprep.mubr.bf16.mxu0 0
      %282 = vmatmul.mubr.bf16.gmra.mxu0 %v235
      %v283 = vpop.f32.mrf.mxu0
      %v284 = vadd.f32 %v220, %v283
      %v285 = vpop.f32.mrf.mxu0
      %v286 = vpop.f32.mrf.mxu0
      %v287 = vpop.f32.mrf.mxu0
      %288 = vdwg.mxu0
      %vm289 = vcmask 97280
      %290 = vst.msk [vmem:[%s208] sm:$0xff] %vm289, %v276
      %291 = vst.msk [vmem:[%s208 + $0x8] sm:$0xff] %vm289, %v279
      %292 = vst.msk [vmem:[%s208 + $0x10] sm:$0xff] %vm289, %v284
      %s293 = smul.u32 3, %s19
      %p294 = scmp.lt.s32.totalorder %s18, 1
      %s295 = scalar_select %p294, %s18, 1
      %p296 = scmp.lt.s32.totalorder %s293, 2
      %s297 = scalar_select %p296, %s293, 2
      %s298 = smul.addr %s295, 3
      %s299 = sadd.s32 %s297, %s298
      %s300 = smul.addr %s299, 8
      %s301 = scalar_lea.vmem %s3, %s300
      // Predicated region
      $region33: #{tpu_custom_call.1} parent=31 // pred_check
        %p302 = pneg %p116
      $region34: #{tpu_custom_call.1} parent=31 // pred_check_branch
        %304 = sbr.rel (%p302) target = $region36
      $region35: #{tpu_custom_call.1} parent=31 // pred_region
        %s305 = smul.u32 3, %s19
      $region36: #{tpu_custom_call.1} parent=31 // pred_fallthru
        _
    $region32: #{tpu_custom_call.1} parent=5 // pred_fallthru
      _
    %p306 = scmp.le.s32.totalorder 2, %s9
    // Predicated region
    $region37: #{tpu_custom_call.1} parent=5 // pred_check
      %p307 = pneg %p306
    $region38: #{tpu_custom_call.1} parent=5 // pred_check_branch
      %309 = sbr.rel (%p307) target = $region40
    $region39: #{tpu_custom_call.1} parent=5 // pred_region
      %s310 = ssub.s32 %s9, 2
      // Predicated region
      $region41: #{tpu_custom_call.1} parent=39 // pred_check
        %p311 = pneg %p122
      $region42: #{tpu_custom_call.1} parent=39 // pred_check_branch
        %313 = sbr.rel (%p311) target = $region44
      $region43: #{tpu_custom_call.1} parent=39 // pred_region
        %s314 = smul.u32 3, %s21
        %p315 = scmp.lt.s32.totalorder %s20, 1
        %s316 = scalar_select %p315, %s20, 1
        %p317 = scmp.lt.s32.totalorder %s314, 2
        %s318 = scalar_select %p317, %s314, 2
        %s319 = smul.addr %s316, 3
        %s320 = sadd.s32 %s318, %s319
        %s321 = smul.addr %s320, 8
        %s322 = scalar_lea.vmem %s3, %s321
      $region44: #{tpu_custom_call.1} parent=39 // pred_fallthru
        _
    $region40: #{tpu_custom_call.1} parent=5 // pred_fallthru
      _
  $region6: #{tpu_custom_call.1} parent=0 // loop_footer
    %s13 = sadd.s32 1, %s9
  $region7: #{tpu_custom_call.1} parent=0 // loop_footer_branch
    %8 = sbr.rel target = $region3
  $region8: #{tpu_custom_call.1} parent=0 // loop_exit
    _

</llo_original>
